<compile_context>
chip_gen: v6e
topology: v6e:2x2x1
jax: 0.10.0
libtpu: 0.0.40
codegen_flags: <defaults>
</compile_context>

<pallas_src>
import jax
import jax.numpy as jnp
from jax.experimental import pallas as pl
from jax.experimental.pallas import tpu as pltpu

NEG_SLOPE = 0.01  # nn.LeakyReLU default negative_slope


def _round_up(n, m):
    return ((n + m - 1) // m) * m


def dense_network_kernel(x_ref, w_ref, o_ref):
    # x_ref: (TB, Dp); w_ref: (4, Dp, Dp) stacked weights in (in, out) layout.
    h = x_ref[...]
    for layer in range(4):  # static unroll: 4 chained matmuls
        lhs = h if h.dtype == w_ref.dtype else h.astype(w_ref.dtype)
        h = jnp.dot(lhs, w_ref[layer], preferred_element_type=jnp.float32)
        if layer < 3:
            # Exact LeakyReLU for slope in (0, 1): max(h, slope*h).
            h = jnp.maximum(h, NEG_SLOPE * h)
    o_ref[...] = h.astype(o_ref.dtype)


def dense_network_forward(x, w1, w2, w3, w4):
    """x: (B, D); w_i: (D, D) in PyTorch Linear layout (out_features, in_features)."""
    B, D = x.shape
    dtype = x.dtype
    dsize = jnp.dtype(dtype).itemsize

    # --- Lane-dense padding of the feature dim (last dim -> multiple of 128). ---
    Dp = _round_up(max(D, 128), 128)
    pad_d = Dp - D
    x_p = jnp.pad(x, ((0, 0), (0, pad_d))) if pad_d else x
    # Stack, transpose to (in, out), cast, zero-pad: one fused copy per weight.
    w_stack = jnp.stack([w1, w2, w3, w4], axis=0).astype(dtype)   # (4, out, in)
    w_t = jnp.swapaxes(w_stack, 1, 2)                              # (4, in, out)
    w_p = jnp.pad(w_t, ((0, 0), (0, pad_d), (0, pad_d))) if pad_d else w_t

    # --- Row tiling: amortize per-step overhead; >= 2 grid steps for v7x megacore. ---
    if B <= 16:
        TB = B                                   # full-extent block (always legal)
    else:
        TB = min(1024, _round_up(pl.cdiv(B, 2), 8))
    nb = pl.cdiv(B, TB)

    x_spec = pl.BlockSpec((TB, Dp), lambda i: (i, 0))
    # Weights resident in VMEM across all grid iterations (constant block index).
    w_spec = pl.BlockSpec((4, Dp, Dp), lambda i: (0, 0, 0))
    out_spec = pl.BlockSpec((TB, Dp), lambda i: (i, 0))

    # --- Explicit VMEM budget (resident weights + double-buffered x/out tiles). ---
    w_bytes = 4 * Dp * Dp * dsize
    tile_bytes = TB * Dp * dsize
    needed = 2 * w_bytes + 2 * 2 * tile_bytes + (2 << 20)  # + headroom
    vmem_limit = int(min(needed, 96 << 20)) if needed > (16 << 20) else None

    cost = pl.CostEstimate(
        flops=2 * 4 * B * Dp * Dp,
        transcendentals=0,
        bytes_accessed=(2 * B * Dp + 4 * Dp * Dp) * dsize,
    )

    out_p = pl.pallas_call(
        dense_network_kernel,
        out_shape=jax.ShapeDtypeStruct((B, Dp), dtype),
        grid_spec=pltpu.PrefetchScalarGridSpec(
            num_scalar_prefetch=0,
            grid=(nb,),
            in_specs=[x_spec, w_spec],
            out_specs=out_spec,
        ),
        compiler_params=pltpu.CompilerParams(
            dimension_semantics=("parallel",),
            vmem_limit_bytes=vmem_limit,
        ),
        cost_estimate=cost,
    )(x_p, w_p)

    return out_p[:, :D] if pad_d else out_p


def dense_network_ref(x, w1, w2, w3, w4):
    """Plain-JAX reference mirroring the PyTorch forward."""
    h = x @ w1.T
    h = jnp.where(h > 0, h, NEG_SLOPE * h)
    h = h @ w2.T
    h = jnp.where(h > 0, h, NEG_SLOPE * h)
    h = h @ w3.T
    h = jnp.where(h > 0, h, NEG_SLOPE * h)
    h = h @ w4.T
    return h


if __name__ == "__main__":
    layer_size = 32
    batch = 8

    key = jax.random.PRNGKey(0)
    kx, k1, k2, k3, k4 = jax.random.split(key, 5)

    # Deterministic synthetic parameters (PyTorch-Linear shapes: (out, in)).
    bound = 1.0 / (layer_size ** 0.5)
    x = jax.random.normal(kx, (batch, layer_size), dtype=jnp.float32)
    w1 = jax.random.uniform(k1, (layer_size, layer_size), jnp.float32, -bound, bound)
    w2 = jax.random.uniform(k2, (layer_size, layer_size), jnp.float32, -bound, bound)
    w3 = jax.random.uniform(k3, (layer_size, layer_size), jnp.float32, -bound, bound)
    w4 = jax.random.uniform(k4, (layer_size, layer_size), jnp.float32, -bound, bound)

    out = dense_network_forward(x, w1, w2, w3, w4)
    out = jax.block_until_ready(out)

    ref = dense_network_ref(x, w1, w2, w3, w4)
    assert out.shape == (batch, layer_size)
    assert jnp.allclose(out, ref, atol=1e-5, rtol=1e-5), "mismatch vs reference"

    print("KERNEL_OK")
</pallas_src>

<mosaic_0001>
module attributes {stable_mosaic.version = 11 : i64} {
  func.func @dense_network_kernel(%arg0: i32, %arg1: memref<8x128xf32, #tpu.memory_space<vmem>>, %arg2: memref<4x128x128xf32, #tpu.memory_space<vmem>>, %arg3: memref<8x128xf32, #tpu.memory_space<vmem>>) attributes {dimension_semantics = [#tpu.dimension_semantics<parallel>], iteration_bounds = array<i64: 1>, scalar_prefetch = 0 : i64, scratch_operands = 0 : i64, tpu.core_type = #tpu.core_type<tc>, window_params = [{transform_indices = @transform_0, window_bounds = array<i64: 8, 128>}, {pipeline_mode = #tpu.pipeline_mode<synchronous>, transform_indices = @transform_1, window_bounds = array<i64: 4, 128, 128>}, {transform_indices = @transform_2, window_bounds = array<i64: 8, 128>}]} {
    %c0 = arith.constant 0 : index
    %c0_0 = arith.constant 0 : index
    %0 = vector.load %arg1[%c0, %c0_0] : memref<8x128xf32, #tpu.memory_space<vmem>>, vector<8x128xf32>
    %c0_1 = arith.constant 0 : index
    %c0_2 = arith.constant 0 : index
    %c0_3 = arith.constant 0 : index
    %1 = vector.load %arg2[%c0_1, %c0_2, %c0_3] : memref<4x128x128xf32, #tpu.memory_space<vmem>>, vector<1x128x128xf32>
    %2 = vector.shape_cast %1 : vector<1x128x128xf32> to vector<128x128xf32>
    %cst = arith.constant dense<0.000000e+00> : vector<8x128xf32>
    %3 = tpu.matmul %0, %2, %cst {dimension_numbers = #tpu.dot_dimension_numbers<[1], [0], [0], [1], [0, 0, 1, 1], [], []>} : vector<8x128xf32>, vector<128x128xf32>, vector<8x128xf32> -> vector<8x128xf32>
    %cst_4 = arith.constant 0.00999999977 : f32
    %4 = vector.broadcast %cst_4 : f32 to vector<8x128xf32>
    %5 = arith.mulf %4, %3 : vector<8x128xf32>
    %6 = arith.maximumf %3, %5 : vector<8x128xf32>
    %c1 = arith.constant 1 : index
    %c0_5 = arith.constant 0 : index
    %c0_6 = arith.constant 0 : index
    %7 = vector.load %arg2[%c1, %c0_5, %c0_6] : memref<4x128x128xf32, #tpu.memory_space<vmem>>, vector<1x128x128xf32>
    %8 = vector.shape_cast %7 : vector<1x128x128xf32> to vector<128x128xf32>
    %cst_7 = arith.constant dense<0.000000e+00> : vector<8x128xf32>
    %9 = tpu.matmul %6, %8, %cst_7 {dimension_numbers = #tpu.dot_dimension_numbers<[1], [0], [0], [1], [0, 0, 1, 1], [], []>} : vector<8x128xf32>, vector<128x128xf32>, vector<8x128xf32> -> vector<8x128xf32>
    %cst_8 = arith.constant 0.00999999977 : f32
    %10 = vector.broadcast %cst_8 : f32 to vector<8x128xf32>
    %11 = arith.mulf %10, %9 : vector<8x128xf32>
    %12 = arith.maximumf %9, %11 : vector<8x128xf32>
    %c2 = arith.constant 2 : index
    %c0_9 = arith.constant 0 : index
    %c0_10 = arith.constant 0 : index
    %13 = vector.load %arg2[%c2, %c0_9, %c0_10] : memref<4x128x128xf32, #tpu.memory_space<vmem>>, vector<1x128x128xf32>
    %14 = vector.shape_cast %13 : vector<1x128x128xf32> to vector<128x128xf32>
    %cst_11 = arith.constant dense<0.000000e+00> : vector<8x128xf32>
    %15 = tpu.matmul %12, %14, %cst_11 {dimension_numbers = #tpu.dot_dimension_numbers<[1], [0], [0], [1], [0, 0, 1, 1], [], []>} : vector<8x128xf32>, vector<128x128xf32>, vector<8x128xf32> -> vector<8x128xf32>
    %cst_12 = arith.constant 0.00999999977 : f32
    %16 = vector.broadcast %cst_12 : f32 to vector<8x128xf32>
    %17 = arith.mulf %16, %15 : vector<8x128xf32>
    %18 = arith.maximumf %15, %17 : vector<8x128xf32>
    %c3 = arith.constant 3 : index
    %c0_13 = arith.constant 0 : index
    %c0_14 = arith.constant 0 : index
    %19 = vector.load %arg2[%c3, %c0_13, %c0_14] : memref<4x128x128xf32, #tpu.memory_space<vmem>>, vector<1x128x128xf32>
    %20 = vector.shape_cast %19 : vector<1x128x128xf32> to vector<128x128xf32>
    %cst_15 = arith.constant dense<0.000000e+00> : vector<8x128xf32>
    %21 = tpu.matmul %18, %20, %cst_15 {dimension_numbers = #tpu.dot_dimension_numbers<[1], [0], [0], [1], [0, 0, 1, 1], [], []>} : vector<8x128xf32>, vector<128x128xf32>, vector<8x128xf32> -> vector<8x128xf32>
    %c0_16 = arith.constant 0 : index
    %c0_17 = arith.constant 0 : index
    %22 = vector.load %arg3[%c0_16, %c0_17] : memref<8x128xf32, #tpu.memory_space<vmem>>, vector<8x128xf32>
    tpu.vector_store %arg3[%c0_16, %c0_17], %21 {strides = array<i32>} : memref<8x128xf32, #tpu.memory_space<vmem>>, vector<8x128xf32>,
    return
  }
  func.func @transform_0(%arg0: i32) -> (i32, i32) {
    %c0_i32 = arith.constant 0 : i32
    %c0_i32_0 = arith.constant 0 : i32
    return %arg0, %c0_i32 : i32, i32
  }
  func.func @transform_1(%arg0: i32) -> (i32, i32, i32) {
    %c0_i32 = arith.constant 0 : i32
    %c0_i32_0 = arith.constant 0 : i32
    %c0_i32_1 = arith.constant 0 : i32
    %c0_i32_2 = arith.constant 0 : i32
    return %c0_i32, %c0_i32_0, %c0_i32_1 : i32, i32, i32
  }
  func.func @transform_2(%arg0: i32) -> (i32, i32) {
    %c0_i32 = arith.constant 0 : i32
    %c0_i32_0 = arith.constant 0 : i32
    return %arg0, %c0_i32 : i32, i32
  }
}

</mosaic_0001>

<llo_original>
// kernel: tpu_custom_call.1
$region0: #{tpu_custom_call.1}
  #allocation0 [shape = 'u32[]', space=smem, size = 0x4, offset = 0x4, fixed_abs, tag = 'smem constant byte address 0x4 - core index']
  #allocation1 [shape = 'u32[144,128]{1,0:T(1,128)}', space=vmem, size = 0x12000, scoped, tag = 'internal scratch']
  %s0 = inlined_call_operand.hbm [shape: f32[8,128], index: 0, kind: input, shape index: {}]
  %s1 = inlined_call_operand.hbm [shape: f32[4,128,128], index: 1, kind: input, shape index: {}]
  %s2 = inlined_call_operand.hbm [shape: f32[8,128], index: 2, kind: output, shape index: {}]
  %s3 = sld [smem:[#allocation0]]
  $region26: #{tpu_custom_call.1} parent=0
    _
  %s5 = ssub.s32 1, %s3
  %s6 = scalar_select 0, %s5, %s3
  $region1: #{tpu_custom_call.1} parent=0
    #allocation2 [shape = 'u8[4096]{0}', space=vmem, size = 0x1000, scoped, tag = 'input window, operand 0, single buffered']
    #allocation3 [shape = 's32[1]{0}', space=sflag, size = 0x4, scoped, tag = 'scoped memory for tpu_custom_call.1']
    #allocation4 [shape = 's32[1]{0}', space=sflag, size = 0x4, scoped, tag = 'scoped memory for tpu_custom_call.1']
    #allocation5 [shape = 'u8[262144]{0}', space=vmem, size = 0x40000, scoped, tag = 'input window, operand 1, single buffered']
    #allocation6 [shape = 's32[1]{0}', space=sflag, size = 0x4, scoped, tag = 'scoped memory for tpu_custom_call.1']
    #allocation7 [shape = 'u8[4096]{0}', space=vmem, size = 0x1000, scoped, tag = 'output window, operand 0, single buffered']
    %7 = vsyncpa [#allocation3], 0
    %8 = vsyncpa [#allocation6], 0
    %9 = vsyncpa [#allocation4], 0
    // Predicated region
    $region2: #{tpu_custom_call.1} parent=1 // pred_check
      _
    $region3: #{tpu_custom_call.1} parent=1 // pred_check_branch
      %11 = sbr.rel (0) target = $region5
    $region4: #{tpu_custom_call.1} parent=1 // pred_region
      %s13 = ssub.s32 128, 128
      %14 = vsyncadd [#allocation3], %s13
      %s16 = sshll.u32 [#allocation2], 4
      %s17 = int_to_ptr.vmem [resolvable:$true] %s16
      %19 = dma.hbm_to_vmem [thread:$0]  %s0, 128, %s17, [#allocation3]
    $region5: #{tpu_custom_call.1} parent=1 // pred_fallthru
      _
    // Predicated region
    $region6: #{tpu_custom_call.1} parent=1 // pred_check
      _
    $region7: #{tpu_custom_call.1} parent=1 // pred_check_branch
      %21 = sbr.rel (0) target = $region9
    $region8: #{tpu_custom_call.1} parent=1 // pred_region
      %s23 = ssub.s32 8192, 8192
      %24 = vsyncadd [#allocation6], %s23
      %s25 = sshll.u32 [#allocation5], 4
      %s26 = int_to_ptr.vmem [resolvable:$true] %s25
      %31 = dma.hbm_to_vmem [thread:$0]  %s1, 8192, %s26, [#allocation6], 128, 128, 8
    $region9: #{tpu_custom_call.1} parent=1 // pred_fallthru
      _
    // Predicated region
    $region10: #{tpu_custom_call.1} parent=1 // pred_check
      _
    $region11: #{tpu_custom_call.1} parent=1 // pred_check_branch
      %33 = sbr.rel (0) target = $region13
    $region12: #{tpu_custom_call.1} parent=1 // pred_region
      %34 = dma.done [#allocation3], 128
    $region13: #{tpu_custom_call.1} parent=1 // pred_fallthru
      _
    // Predicated region
    $region14: #{tpu_custom_call.1} parent=1 // pred_check
      _
    $region15: #{tpu_custom_call.1} parent=1 // pred_check_branch
      %36 = sbr.rel (0) target = $region17
    $region16: #{tpu_custom_call.1} parent=1 // pred_region
      %37 = dma.done [#allocation6], 8192
    $region17: #{tpu_custom_call.1} parent=1 // pred_fallthru
      _
    %v38 = vld [vmem:[#allocation2] sm:$0xff]
    %v39 = vld [vmem:[#allocation5] sm:$0xff]
    %v40 = vld [vmem:[#allocation5 + $0x8] sm:$0xff]
    %v41 = vld [vmem:[#allocation5 + $0x10] sm:$0xff]
    %v42 = vld [vmem:[#allocation5 + $0x18] sm:$0xff]
    %v43 = vld [vmem:[#allocation5 + $0x20] sm:$0xff]
    %v44 = vld [vmem:[#allocation5 + $0x28] sm:$0xff]
    %v45 = vld [vmem:[#allocation5 + $0x30] sm:$0xff]
    %v46 = vld [vmem:[#allocation5 + $0x38] sm:$0xff]
    %v47 = vld [vmem:[#allocation5 + $0x40] sm:$0xff]
    %v48 = vld [vmem:[#allocation5 + $0x48] sm:$0xff]
    %v49 = vld [vmem:[#allocation5 + $0x50] sm:$0xff]
    %v50 = vld [vmem:[#allocation5 + $0x58] sm:$0xff]
    %v51 = vld [vmem:[#allocation5 + $0x60] sm:$0xff]
    %v52 = vld [vmem:[#allocation5 + $0x68] sm:$0xff]
    %v53 = vld [vmem:[#allocation5 + $0x70] sm:$0xff]
    %v54 = vld [vmem:[#allocation5 + $0x78] sm:$0xff]
    %55 = vmatprep.subr.mxu0 0.0
    %56 = vmatpush1.msra.mxu0 %v54
    %57 = vmatprep.subr.mxu0 0.0
    %58 = vmatpush1.msra.mxu0 %v53
    %59 = vmatprep.subr.mxu0 0.0
    %60 = vmatpush1.msra.mxu0 %v52
    %61 = vmatprep.subr.mxu0 0.0
    %62 = vmatpush1.msra.mxu0 %v51
    %63 = vmatprep.subr.mxu0 0.0
    %64 = vmatpush1.msra.mxu0 %v50
    %65 = vmatprep.subr.mxu0 0.0
    %66 = vmatpush1.msra.mxu0 %v49
    %67 = vmatprep.subr.mxu0 0.0
    %68 = vmatpush1.msra.mxu0 %v48
    %69 = vmatprep.subr.mxu0 0.0
    %70 = vmatpush1.msra.mxu0 %v47
    %71 = vmatprep.subr.mxu0 0.0
    %72 = vmatpush1.msra.mxu0 %v46
    %73 = vmatprep.subr.mxu0 0.0
    %74 = vmatpush1.msra.mxu0 %v45
    %75 = vmatprep.subr.mxu0 0.0
    %76 = vmatpush1.msra.mxu0 %v44
    %77 = vmatprep.subr.mxu0 0.0
    %78 = vmatpush1.msra.mxu0 %v43
    %79 = vmatprep.subr.mxu0 0.0
    %80 = vmatpush1.msra.mxu0 %v42
    %81 = vmatprep.subr.mxu0 0.0
    %82 = vmatpush1.msra.mxu0 %v41
    %83 = vmatprep.subr.mxu0 0.0
    %84 = vmatpush1.msra.mxu0 %v40
    %85 = vmatprep.subr.mxu0 0.0
    %86 = vmatpush1.msra.mxu0 %v39
    %87 = vmatprep.subr.mxu0 0.0
    %88 = vmatpush2.msra.mxu0 0.0
    %89 = vmatprep.subr.mxu0 0.0
    %90 = vmatpush2.msra.mxu0 0.0
    %91 = vmatprep.subr.mxu0 0.0
    %92 = vmatpush2.msra.mxu0 0.0
    %93 = vmatprep.subr.mxu0 0.0
    %94 = vmatpush2.msra.mxu0 0.0
    %95 = vmatprep.subr.mxu0 0.0
    %96 = vmatpush2.msra.mxu0 0.0
    %97 = vmatprep.subr.mxu0 0.0
    %98 = vmatpush2.msra.mxu0 0.0
    %99 = vmatprep.subr.mxu0 0.0
    %100 = vmatpush2.msra.mxu0 0.0
    %101 = vmatprep.subr.mxu0 0.0
    %102 = vmatpush2.msra.mxu0 0.0
    %103 = vmatprep.subr.mxu0 0.0
    %104 = vmatpush2.msra.mxu0 0.0
    %105 = vmatprep.subr.mxu0 0.0
    %106 = vmatpush2.msra.mxu0 0.0
    %107 = vmatprep.subr.mxu0 0.0
    %108 = vmatpush2.msra.mxu0 0.0
    %109 = vmatprep.subr.mxu0 0.0
    %110 = vmatpush2.msra.mxu0 0.0
    %111 = vmatprep.subr.mxu0 0.0
    %112 = vmatpush2.msra.mxu0 0.0
    %113 = vmatprep.subr.mxu0 0.0
    %114 = vmatpush2.msra.mxu0 0.0
    %115 = vmatprep.subr.mxu0 0.0
    %116 = vmatpush2.msra.mxu0 0.0
    %117 = vmatprep.subr.mxu0 0.0
    %118 = vmatpush2.msra.mxu0 0.0
    %119 = vmatprep.mubr.f32.mxu0 0.0
    %120 = vmatmul.mubr.f32.gmra.mxu0 %v38
    %v121 = vpop.f32.mrf.mxu0
    %v122 = vadd.f32 0.0, %v121
    %v123 = vpop.f32.mrf.mxu0
    %124 = vdwg.mxu0
    %v125 = vmul.f32 %v122, 0.01
    %v126 = vmax.f32 %v122, %v125
    %s127 = scalar_lea.vmem [#allocation5], 128
    %v128 = vld [vmem:[%s127] sm:$0xff]
    %v129 = vld [vmem:[%s127 + $0x8] sm:$0xff]
    %v130 = vld [vmem:[%s127 + $0x10] sm:$0xff]
    %v131 = vld [vmem:[%s127 + $0x18] sm:$0xff]
    %v132 = vld [vmem:[%s127 + $0x20] sm:$0xff]
    %v133 = vld [vmem:[%s127 + $0x28] sm:$0xff]
    %v134 = vld [vmem:[%s127 + $0x30] sm:$0xff]
    %v135 = vld [vmem:[%s127 + $0x38] sm:$0xff]
    %v136 = vld [vmem:[%s127 + $0x40] sm:$0xff]
    %v137 = vld [vmem:[%s127 + $0x48] sm:$0xff]
    %v138 = vld [vmem:[%s127 + $0x50] sm:$0xff]
    %v139 = vld [vmem:[%s127 + $0x58] sm:$0xff]
    %v140 = vld [vmem:[%s127 + $0x60] sm:$0xff]
    %v141 = vld [vmem:[%s127 + $0x68] sm:$0xff]
    %v142 = vld [vmem:[%s127 + $0x70] sm:$0xff]
    %v143 = vld [vmem:[%s127 + $0x78] sm:$0xff]
    %144 = vmatprep.subr.mxu0 0.0
    %145 = vmatpush1.msra.mxu0 %v143
    %146 = vmatprep.subr.mxu0 0.0
    %147 = vmatpush1.msra.mxu0 %v142
    %148 = vmatprep.subr.mxu0 0.0
    %149 = vmatpush1.msra.mxu0 %v141
    %150 = vmatprep.subr.mxu0 0.0
    %151 = vmatpush1.msra.mxu0 %v140
    %152 = vmatprep.subr.mxu0 0.0
    %153 = vmatpush1.msra.mxu0 %v139
    %154 = vmatprep.subr.mxu0 0.0
    %155 = vmatpush1.msra.mxu0 %v138
    %156 = vmatprep.subr.mxu0 0.0
    %157 = vmatpush1.msra.mxu0 %v137
    %158 = vmatprep.subr.mxu0 0.0
    %159 = vmatpush1.msra.mxu0 %v136
    %160 = vmatprep.subr.mxu0 0.0
    %161 = vmatpush1.msra.mxu0 %v135
    %162 = vmatprep.subr.mxu0 0.0
    %163 = vmatpush1.msra.mxu0 %v134
    %164 = vmatprep.subr.mxu0 0.0
    %165 = vmatpush1.msra.mxu0 %v133
    %166 = vmatprep.subr.mxu0 0.0
    %167 = vmatpush1.msra.mxu0 %v132
    %168 = vmatprep.subr.mxu0 0.0
    %169 = vmatpush1.msra.mxu0 %v131
    %170 = vmatprep.subr.mxu0 0.0
    %171 = vmatpush1.msra.mxu0 %v130
    %172 = vmatprep.subr.mxu0 0.0
    %173 = vmatpush1.msra.mxu0 %v129
    %174 = vmatprep.subr.mxu0 0.0
    %175 = vmatpush1.msra.mxu0 %v128
    %176 = vmatprep.subr.mxu0 0.0
    %177 = vmatpush2.msra.mxu0 0.0
    %178 = vmatprep.subr.mxu0 0.0
    %179 = vmatpush2.msra.mxu0 0.0
    %180 = vmatprep.subr.mxu0 0.0
    %181 = vmatpush2.msra.mxu0 0.0
    %182 = vmatprep.subr.mxu0 0.0
    %183 = vmatpush2.msra.mxu0 0.0
    %184 = vmatprep.subr.mxu0 0.0
    %185 = vmatpush2.msra.mxu0 0.0
    %186 = vmatprep.subr.mxu0 0.0
    %187 = vmatpush2.msra.mxu0 0.0
    %188 = vmatprep.subr.mxu0 0.0
    %189 = vmatpush2.msra.mxu0 0.0
    %190 = vmatprep.subr.mxu0 0.0
    %191 = vmatpush2.msra.mxu0 0.0
    %192 = vmatprep.subr.mxu0 0.0
    %193 = vmatpush2.msra.mxu0 0.0
    %194 = vmatprep.subr.mxu0 0.0
    %195 = vmatpush2.msra.mxu0 0.0
    %196 = vmatprep.subr.mxu0 0.0
    %197 = vmatpush2.msra.mxu0 0.0
    %198 = vmatprep.subr.mxu0 0.0
    %199 = vmatpush2.msra.mxu0 0.0
    %200 = vmatprep.subr.mxu0 0.0
    %201 = vmatpush2.msra.mxu0 0.0
    %202 = vmatprep.subr.mxu0 0.0
    %203 = vmatpush2.msra.mxu0 0.0
    %204 = vmatprep.subr.mxu0 0.0
    %205 = vmatpush2.msra.mxu0 0.0
    %206 = vmatprep.subr.mxu0 0.0
    %207 = vmatpush2.msra.mxu0 0.0
    %208 = vmatprep.mubr.f32.mxu0 0.0
    %209 = vmatmul.mubr.f32.gmra.mxu0 %v126
    %v210 = vpop.f32.mrf.mxu0
    %v211 = vadd.f32 0.0, %v210
    %v212 = vpop.f32.mrf.mxu0
    %213 = vdwg.mxu0
    %v214 = vmul.f32 %v211, 0.01
    %v215 = vmax.f32 %v211, %v214
    %s216 = scalar_lea.vmem [#allocation5], 256
    %v217 = vld [vmem:[%s216] sm:$0xff]
    %v218 = vld [vmem:[%s216 + $0x8] sm:$0xff]
    %v219 = vld [vmem:[%s216 + $0x10] sm:$0xff]
    %v220 = vld [vmem:[%s216 + $0x18] sm:$0xff]
    %v221 = vld [vmem:[%s216 + $0x20] sm:$0xff]
    %v222 = vld [vmem:[%s216 + $0x28] sm:$0xff]
    %v223 = vld [vmem:[%s216 + $0x30] sm:$0xff]
    %v224 = vld [vmem:[%s216 + $0x38] sm:$0xff]
    %v225 = vld [vmem:[%s216 + $0x40] sm:$0xff]
    %v226 = vld [vmem:[%s216 + $0x48] sm:$0xff]
    %v227 = vld [vmem:[%s216 + $0x50] sm:$0xff]
    %v228 = vld [vmem:[%s216 + $0x58] sm:$0xff]
    %v229 = vld [vmem:[%s216 + $0x60] sm:$0xff]
    %v230 = vld [vmem:[%s216 + $0x68] sm:$0xff]
    %v231 = vld [vmem:[%s216 + $0x70] sm:$0xff]
    %v232 = vld [vmem:[%s216 + $0x78] sm:$0xff]
    %233 = vmatprep.subr.mxu0 0.0
    %234 = vmatpush1.msra.mxu0 %v232
    %235 = vmatprep.subr.mxu0 0.0
    %236 = vmatpush1.msra.mxu0 %v231
    %237 = vmatprep.subr.mxu0 0.0
    %238 = vmatpush1.msra.mxu0 %v230
    %239 = vmatprep.subr.mxu0 0.0
    %240 = vmatpush1.msra.mxu0 %v229
    %241 = vmatprep.subr.mxu0 0.0
    %242 = vmatpush1.msra.mxu0 %v228
    %243 = vmatprep.subr.mxu0 0.0
    %244 = vmatpush1.msra.mxu0 %v227
    %245 = vmatprep.subr.mxu0 0.0
    %246 = vmatpush1.msra.mxu0 %v226
    %247 = vmatprep.subr.mxu0 0.0
    %248 = vmatpush1.msra.mxu0 %v225
    %249 = vmatprep.subr.mxu0 0.0
    %250 = vmatpush1.msra.mxu0 %v224
    %251 = vmatprep.subr.mxu0 0.0
    %252 = vmatpush1.msra.mxu0 %v223
    %253 = vmatprep.subr.mxu0 0.0
    %254 = vmatpush1.msra.mxu0 %v222
    %255 = vmatprep.subr.mxu0 0.0
    %256 = vmatpush1.msra.mxu0 %v221
    %257 = vmatprep.subr.mxu0 0.0
    %258 = vmatpush1.msra.mxu0 %v220
    %259 = vmatprep.subr.mxu0 0.0
    %260 = vmatpush1.msra.mxu0 %v219
    %261 = vmatprep.subr.mxu0 0.0
    %262 = vmatpush1.msra.mxu0 %v218
    %263 = vmatprep.subr.mxu0 0.0
    %264 = vmatpush1.msra.mxu0 %v217
    %265 = vmatprep.subr.mxu0 0.0
    %266 = vmatpush2.msra.mxu0 0.0
    %267 = vmatprep.subr.mxu0 0.0
    %268 = vmatpush2.msra.mxu0 0.0
    %269 = vmatprep.subr.mxu0 0.0
    %270 = vmatpush2.msra.mxu0 0.0
    %271 = vmatprep.subr.mxu0 0.0
    %272 = vmatpush2.msra.mxu0 0.0
    %273 = vmatprep.subr.mxu0 0.0
    %274 = vmatpush2.msra.mxu0 0.0
    %275 = vmatprep.subr.mxu0 0.0
    %276 = vmatpush2.msra.mxu0 0.0
    %277 = vmatprep.subr.mxu0 0.0
    %278 = vmatpush2.msra.mxu0 0.0
    %279 = vmatprep.subr.mxu0 0.0
    %280 = vmatpush2.msra.mxu0 0.0
    %281 = vmatprep.subr.mxu0 0.0
    %282 = vmatpush2.msra.mxu0 0.0
    %283 = vmatprep.subr.mxu0 0.0
    %284 = vmatpush2.msra.mxu0 0.0
    %285 = vmatprep.subr.mxu0 0.0
    %286 = vmatpush2.msra.mxu0 0.0
    %287 = vmatprep.subr.mxu0 0.0
    %288 = vmatpush2.msra.mxu0 0.0
    %289 = vmatprep.subr.mxu0 0.0
    %290 = vmatpush2.msra.mxu0 0.0
    %291 = vmatprep.subr.mxu0 0.0
    %292 = vmatpush2.msra.mxu0 0.0
    %293 = vmatprep.subr.mxu0 0.0
    %294 = vmatpush2.msra.mxu0 0.0
    %295 = vmatprep.subr.mxu0 0.0
    %296 = vmatpush2.msra.mxu0 0.0
    %297 = vmatprep.mubr.f32.mxu0 0.0
    %298 = vmatmul.mubr.f32.gmra.mxu0 %v215
    %v299 = vpop.f32.mrf.mxu0
    %v300 = vadd.f32 0.0, %v299
    %v301 = vpop.f32.mrf.mxu0
    %302 = vdwg.mxu0
    %v303 = vmul.f32 %v300, 0.01
    %v304 = vmax.f32 %v300, %v303
    %s305 = scalar_lea.vmem [#allocation5], 384
    %v306 = vld [vmem:[%s305] sm:$0xff]
    %v307 = vld [vmem:[%s305 + $0x8] sm:$0xff]
    %v308 = vld [vmem:[%s305 + $0x10] sm:$0xff]
    %v309 = vld [vmem:[%s305 + $0x18] sm:$0xff]
    %v310 = vld [vmem:[%s305 + $0x20] sm:$0xff]
    %v311 = vld [vmem:[%s305 + $0x28] sm:$0xff]
    %v312 = vld [vmem:[%s305 + $0x30] sm:$0xff]
    %v313 = vld [vmem:[%s305 + $0x38] sm:$0xff]
    %v314 = vld [vmem:[%s305 + $0x40] sm:$0xff]
    %v315 = vld [vmem:[%s305 + $0x48] sm:$0xff]
    %v316 = vld [vmem:[%s305 + $0x50] sm:$0xff]
    %v317 = vld [vmem:[%s305 + $0x58] sm:$0xff]
    %v318 = vld [vmem:[%s305 + $0x60] sm:$0xff]
    %v319 = vld [vmem:[%s305 + $0x68] sm:$0xff]
    %v320 = vld [vmem:[%s305 + $0x70] sm:$0xff]
    %v321 = vld [vmem:[%s305 + $0x78] sm:$0xff]
    %322 = vmatprep.subr.mxu0 0.0
    %323 = vmatpush1.msra.mxu0 %v321
    %324 = vmatprep.subr.mxu0 0.0
    %325 = vmatpush1.msra.mxu0 %v320
    %326 = vmatprep.subr.mxu0 0.0
    %327 = vmatpush1.msra.mxu0 %v319
    %328 = vmatprep.subr.mxu0 0.0
    %329 = vmatpush1.msra.mxu0 %v318
    %330 = vmatprep.subr.mxu0 0.0
    %331 = vmatpush1.msra.mxu0 %v317
    %332 = vmatprep.subr.mxu0 0.0
    %333 = vmatpush1.msra.mxu0 %v316
    %334 = vmatprep.subr.mxu0 0.0
    %335 = vmatpush1.msra.mxu0 %v315
    %336 = vmatprep.subr.mxu0 0.0
    %337 = vmatpush1.msra.mxu0 %v314
    %338 = vmatprep.subr.mxu0 0.0
    %339 = vmatpush1.msra.mxu0 %v313
    %340 = vmatprep.subr.mxu0 0.0
    %341 = vmatpush1.msra.mxu0 %v312
    %342 = vmatprep.subr.mxu0 0.0
    %343 = vmatpush1.msra.mxu0 %v311
    %344 = vmatprep.subr.mxu0 0.0
    %345 = vmatpush1.msra.mxu0 %v310
    %346 = vmatprep.subr.mxu0 0.0
    %347 = vmatpush1.msra.mxu0 %v309
    %348 = vmatprep.subr.mxu0 0.0
    %349 = vmatpush1.msra.mxu0 %v308
    %350 = vmatprep.subr.mxu0 0.0
    %351 = vmatpush1.msra.mxu0 %v307
    %352 = vmatprep.subr.mxu0 0.0
    %353 = vmatpush1.msra.mxu0 %v306
    %354 = vmatprep.subr.mxu0 0.0
    %355 = vmatpush2.msra.mxu0 0.0
    %356 = vmatprep.subr.mxu0 0.0
    %357 = vmatpush2.msra.mxu0 0.0
    %358 = vmatprep.subr.mxu0 0.0
    %359 = vmatpush2.msra.mxu0 0.0
    %360 = vmatprep.subr.mxu0 0.0
    %361 = vmatpush2.msra.mxu0 0.0
    %362 = vmatprep.subr.mxu0 0.0
    %363 = vmatpush2.msra.mxu0 0.0
    %364 = vmatprep.subr.mxu0 0.0
    %365 = vmatpush2.msra.mxu0 0.0
    %366 = vmatprep.subr.mxu0 0.0
    %367 = vmatpush2.msra.mxu0 0.0
    %368 = vmatprep.subr.mxu0 0.0
    %369 = vmatpush2.msra.mxu0 0.0
    %370 = vmatprep.subr.mxu0 0.0
    %371 = vmatpush2.msra.mxu0 0.0
    %372 = vmatprep.subr.mxu0 0.0
    %373 = vmatpush2.msra.mxu0 0.0
    %374 = vmatprep.subr.mxu0 0.0
    %375 = vmatpush2.msra.mxu0 0.0
    %376 = vmatprep.subr.mxu0 0.0
    %377 = vmatpush2.msra.mxu0 0.0
    %378 = vmatprep.subr.mxu0 0.0
    %379 = vmatpush2.msra.mxu0 0.0
    %380 = vmatprep.subr.mxu0 0.0
    %381 = vmatpush2.msra.mxu0 0.0
    %382 = vmatprep.subr.mxu0 0.0
    %383 = vmatpush2.msra.mxu0 0.0
    %384 = vmatprep.subr.mxu0 0.0
    %385 = vmatpush2.msra.mxu0 0.0
    %386 = vmatprep.mubr.f32.mxu0 0.0
    %387 = vmatmul.mubr.f32.gmra.mxu0 %v304
    %v388 = vpop.f32.mrf.mxu0
    %v389 = vadd.f32 0.0, %v388
    %v390 = vpop.f32.mrf.mxu0
    %391 = vdwg.mxu0
    %392 = vst [vmem:[#allocation7] sm:$0xff] %v389
    // Predicated region
    $region18: #{tpu_custom_call.1} parent=1 // pred_check
      _
    $region19: #{tpu_custom_call.1} parent=1 // pred_check_branch
      %394 = sbr.rel (0) target = $region21
    $region20: #{tpu_custom_call.1} parent=1 // pred_region
      %s396 = ssub.s32 128, 128
      %397 = vsyncadd [#allocation4], %s396
      %s399 = sshll.u32 [#allocation7], 4
      %s400 = int_to_ptr.vmem [resolvable:$true] %s399
      %402 = dma.vmem_to_hbm [thread:$0]  %s400, 128, %s2, [#allocation4]
    $region21: #{tpu_custom_call.1} parent=1 // pred_fallthru
      _
    // Predicated region
    $region22: #{tpu_custom_call.1} parent=1 // pred_check
      _
    $region23: #{tpu_custom_call.1} parent=1 // pred_check_branch
      %404 = sbr.rel (0) target = $region25
    $region24: #{tpu_custom_call.1} parent=1 // pred_region
      %405 = dma.done [#allocation4], 128
    $region25: #{tpu_custom_call.1} parent=1 // pred_fallthru
      _
    %406 = vsyncpa [#allocation3], 1
    %407 = vsyncpa [#allocation6], 1
    %408 = vsyncpa [#allocation4], 1

</llo_original>
